<compile_context>
chip_gen: v6e
topology: v6e:2x2x1
jax: 0.10.0
libtpu: 0.0.40
codegen_flags: <defaults>
</compile_context>

<pallas_src>
import functools

import jax
import jax.numpy as jnp
import numpy as np
from jax.experimental import pallas as pl
from jax.experimental.pallas import tpu as pltpu


# ----------------------------------------------------------------------------
# Fused kernel: 3x (conv1d + BN + ReLU) + mean-pool + FC for one batch tile.
#   x_ref  : (BB, T, Cin)       input tile, channels-last
#   wN_ref : (K*Cin_N, Cout_N)  im2col conv weights, BN scale folded in
#   sN_ref : (1, Cout_N)        folded conv-bias/BN shift
#   fcw_ref: (C3, NP)           FC weights with 1/T folded in, lane-padded to NP
#   fcb_ref: (1, NP)            FC bias, lane-padded
#   out_ref: (BB, 1, NP)        logits (padded classes are exactly zero)
# ----------------------------------------------------------------------------
def _temporal_cnn_kernel(x_ref, w1_ref, s1_ref, w2_ref, s2_ref,
                         w3_ref, s3_ref, fcw_ref, fcb_ref, out_ref):
    BB, T, _ = x_ref.shape

    def tap(x, s):
        # out[:, t, :] = x[:, t + s, :], zero where t + s falls outside [0, T).
        if s == 0:
            return x
        c = x.shape[-1]
        zeros = jnp.zeros((BB, abs(s), c), x.dtype)
        if s > 0:
            return jnp.concatenate([x[:, s:, :], zeros], axis=1)
        return jnp.concatenate([zeros, x[:, :T + s, :]], axis=1)

    def conv_bn_relu(x, w_ref, shift_ref):
        cin = x.shape[-1]
        kc, cout = w_ref.shape
        k_taps = kc // cin
        pad = (k_taps - 1) // 2
        # im2col: K shifted views concatenated along the channel (lane) axis,
        # then ONE (BB*T, K*Cin) @ (K*Cin, Cout) MXU matmul.
        lhs = jnp.concatenate([tap(x, k - pad) for k in range(k_taps)], axis=-1)
        acc = jnp.dot(lhs.reshape(BB * T, kc), w_ref[...],
                      preferred_element_type=jnp.float32)
        y = jnp.maximum(acc + shift_ref[...], 0.0)     # folded bias/BN shift + ReLU
        return y.reshape(BB, T, cout)

    h = conv_bn_relu(x_ref[...].astype(jnp.float32), w1_ref, s1_ref)
    h = conv_bn_relu(h, w2_ref, s2_ref)
    h = conv_bn_relu(h, w3_ref, s3_ref)
    # Dropout layers: identity in inference mode.

    pooled = jnp.sum(h, axis=1)                        # (BB, C3); 1/T folded into fcw
    logits = jnp.dot(pooled, fcw_ref[...],
                     preferred_element_type=jnp.float32) + fcb_ref[...]
    out_ref[...] = logits.reshape(out_ref.shape).astype(out_ref.dtype)


def temporal_cnn_pallas(kp, x_nlc, block_b=1):
    """kp: folded kernel params; x_nlc: (B, T, Cin) channels-last -> (B, NP) logits."""
    B, T, Cin = x_nlc.shape
    w1, s1 = kp["w1"], kp["s1"]
    w2, s2 = kp["w2"], kp["s2"]
    w3, s3 = kp["w3"], kp["s3"]
    fcw, fcb = kp["fcw"], kp["fcb"]
    C1, C2, C3 = w1.shape[1], w2.shape[1], w3.shape[1]
    NP = fcw.shape[1]

    bb = max(1, min(block_b, B))
    grid = (pl.cdiv(B, bb),)

    flops = (2 * B * T * (w1.shape[0] * C1 + w2.shape[0] * C2 + w3.shape[0] * C3)
             + 2 * B * C3 * NP)
    bytes_accessed = 4 * (B * T * Cin + B * NP
                          + w1.size + s1.size + w2.size + s2.size
                          + w3.size + s3.size + fcw.size + fcb.size)

    out = pl.pallas_call(
        _temporal_cnn_kernel,
        out_shape=jax.ShapeDtypeStruct((B, 1, NP), jnp.float32),
        grid=grid,
        in_specs=[
            pl.BlockSpec((bb, T, Cin), lambda b: (b, 0, 0)),
            pl.BlockSpec(w1.shape, lambda b: (0, 0)),
            pl.BlockSpec(s1.shape, lambda b: (0, 0)),
            pl.BlockSpec(w2.shape, lambda b: (0, 0)),
            pl.BlockSpec(s2.shape, lambda b: (0, 0)),
            pl.BlockSpec(w3.shape, lambda b: (0, 0)),
            pl.BlockSpec(s3.shape, lambda b: (0, 0)),
            pl.BlockSpec(fcw.shape, lambda b: (0, 0)),
            pl.BlockSpec(fcb.shape, lambda b: (0, 0)),
        ],
        out_specs=pl.BlockSpec((bb, 1, NP), lambda b: (b, 0, 0)),
        compiler_params=pltpu.CompilerParams(
            dimension_semantics=("parallel",)),
        cost_estimate=pl.CostEstimate(
            flops=flops, transcendentals=0, bytes_accessed=bytes_accessed),
    )(x_nlc, w1, s1, w2, s2, w3, s3, fcw, fcb)
    return out[:, 0, :]


# ----------------------------------------------------------------------------
# Parameter construction (deterministic, synthetic).  Returns both the folded
# kernel params and the raw PyTorch-style params (for the pure-JAX reference).
# ----------------------------------------------------------------------------
def make_params(key, input_channels, num_classes, kernel_size=3):
    assert kernel_size % 2 == 1, "only odd kernel_size matches PyTorch padding=K//2 length"
    channels = [input_channels, 64, 128, 256]
    eps = 1e-5
    keys = jax.random.split(key, 8)
    ki = 0
    folded = {"layers": []}
    raw = {"layers": []}
    for li in range(3):
        cin, cout = channels[li], channels[li + 1]
        w = 0.05 * jax.random.normal(keys[ki], (cout, cin, kernel_size), jnp.float32); ki += 1
        b = 0.05 * jax.random.normal(keys[ki], (cout,), jnp.float32); ki += 1
        # BatchNorm (eval-mode): gamma=1, beta=0, running_mean=0, running_var=1
        gamma = jnp.ones((cout,), jnp.float32)
        beta = jnp.zeros((cout,), jnp.float32)
        mean = jnp.zeros((cout,), jnp.float32)
        var = jnp.ones((cout,), jnp.float32)
        raw["layers"].append({"w": w, "b": b, "gamma": gamma, "beta": beta,
                              "mean": mean, "var": var})
        scale = gamma / jnp.sqrt(var + eps)                         # (Cout,)
        shift = (b - mean) * scale + beta                           # (Cout,)
        # im2col weights with BN scale folded: row k*Cin+ci holds w[co,ci,k]*scale[co]
        w_taps = jnp.transpose(w, (2, 1, 0)) * scale[None, None, :]  # (K, Cin, Cout)
        folded["layers"].append({
            "w": w_taps.reshape(kernel_size * cin, cout),
            "shift": shift.reshape(1, cout),
        })
    fc_w = 0.05 * jax.random.normal(keys[ki], (num_classes, 256), jnp.float32); ki += 1
    fc_b = 0.05 * jax.random.normal(keys[ki], (num_classes,), jnp.float32); ki += 1
    raw["fc_w"], raw["fc_b"] = fc_w, fc_b
    folded["fc_w"] = fc_w.T                                         # (256, num_classes)
    folded["fc_b"] = fc_b.reshape(1, num_classes)
    return folded, raw


@jax.jit
def temporal_cnn_forward(params, x_ncw):
    """x_ncw: (B, Cin, T) like PyTorch NCW input -> (B, num_classes) logits."""
    x = jnp.transpose(x_ncw, (0, 2, 1)).astype(jnp.float32)         # (B, T, Cin)
    B, T, Cin = x.shape
    N = params["fc_w"].shape[1]
    NP = ((N + 127) // 128) * 128                                   # lane-dense FC output
    # Fold mean-pool's 1/T into the FC weights; pad FC to NP columns (sliced below).
    fcw = jnp.pad(params["fc_w"] * (1.0 / T), ((0, 0), (0, NP - N)))
    fcb = jnp.pad(params["fc_b"], ((0, 0), (0, NP - N)))
    kp = {
        "w1": params["layers"][0]["w"], "s1": params["layers"][0]["shift"],
        "w2": params["layers"][1]["w"], "s2": params["layers"][1]["shift"],
        "w3": params["layers"][2]["w"], "s3": params["layers"][2]["shift"],
        "fcw": fcw, "fcb": fcb,
    }
    logits = temporal_cnn_pallas(kp, x)
    return logits[:, :N]


# ----------------------------------------------------------------------------
# Pure-JAX reference (eval-mode PyTorch semantics) for a correctness check.
# ----------------------------------------------------------------------------
def reference_forward(raw, x_ncw, eps=1e-5):
    x = x_ncw
    for lyr in raw["layers"]:
        w, b = lyr["w"], lyr["b"]                                   # (Cout, Cin, K), (Cout,)
        pad = (w.shape[-1] - 1) // 2
        y = jax.lax.conv_general_dilated(
            x, w, window_strides=(1,), padding=[(pad, pad)],
            dimension_numbers=("NCH", "OIH", "NCH"),
            precision=jax.lax.Precision.HIGHEST)
        y = y + b[None, :, None]
        scale = lyr["gamma"] / jnp.sqrt(lyr["var"] + eps)
        y = (y - lyr["mean"][None, :, None]) * scale[None, :, None] + lyr["beta"][None, :, None]
        x = jnp.maximum(y, 0.0)
    m = jnp.mean(x, axis=2)                                         # (B, 256)
    return jnp.dot(m, raw["fc_w"].T, precision=jax.lax.Precision.HIGHEST) + raw["fc_b"]


if __name__ == "__main__":
    key = jax.random.PRNGKey(0)
    k_params, k_x = jax.random.split(key)

    input_channels = 4
    num_classes = 10
    batch = 2
    seq_len = 16

    folded_params, raw_params = make_params(k_params, input_channels, num_classes, kernel_size=3)
    x = jax.random.normal(k_x, (batch, input_channels, seq_len), jnp.float32)

    out = temporal_cnn_forward(folded_params, x)
    out = jax.block_until_ready(out)
    assert out.shape == (batch, num_classes), out.shape
    assert bool(jnp.all(jnp.isfinite(out)))

    ref = reference_forward(raw_params, x)
    np.testing.assert_allclose(np.asarray(out), np.asarray(ref), rtol=2e-2, atol=2e-3)
    print("KERNEL_OK")
</pallas_src>

<mosaic_0001>
module attributes {stable_mosaic.version = 11 : i64} {
  func.func @_temporal_cnn_kernel(%arg0: i32, %arg1: memref<1x16x4xf32, #tpu.memory_space<vmem>>, %arg2: memref<12x64xf32, #tpu.memory_space<vmem>>, %arg3: memref<1x64xf32, #tpu.memory_space<vmem>>, %arg4: memref<192x128xf32, #tpu.memory_space<vmem>>, %arg5: memref<1x128xf32, #tpu.memory_space<vmem>>, %arg6: memref<384x256xf32, #tpu.memory_space<vmem>>, %arg7: memref<1x256xf32, #tpu.memory_space<vmem>>, %arg8: memref<256x128xf32, #tpu.memory_space<vmem>>, %arg9: memref<1x128xf32, #tpu.memory_space<vmem>>, %arg10: memref<1x1x128xf32, #tpu.memory_space<vmem>>) attributes {dimension_semantics = [#tpu.dimension_semantics<parallel>], iteration_bounds = array<i64: 2>, scalar_prefetch = 0 : i64, scratch_operands = 0 : i64, tpu.core_type = #tpu.core_type<tc>, window_params = [{transform_indices = @transform_0, window_bounds = array<i64: 1, 16, 4>}, {pipeline_mode = #tpu.pipeline_mode<synchronous>, transform_indices = @transform_1, window_bounds = array<i64: 12, 64>}, {pipeline_mode = #tpu.pipeline_mode<synchronous>, transform_indices = @transform_2, window_bounds = array<i64: 1, 64>}, {pipeline_mode = #tpu.pipeline_mode<synchronous>, transform_indices = @transform_3, window_bounds = array<i64: 192, 128>}, {pipeline_mode = #tpu.pipeline_mode<synchronous>, transform_indices = @transform_4, window_bounds = array<i64: 1, 128>}, {pipeline_mode = #tpu.pipeline_mode<synchronous>, transform_indices = @transform_5, window_bounds = array<i64: 384, 256>}, {pipeline_mode = #tpu.pipeline_mode<synchronous>, transform_indices = @transform_6, window_bounds = array<i64: 1, 256>}, {pipeline_mode = #tpu.pipeline_mode<synchronous>, transform_indices = @transform_7, window_bounds = array<i64: 256, 128>}, {pipeline_mode = #tpu.pipeline_mode<synchronous>, transform_indices = @transform_8, window_bounds = array<i64: 1, 128>}, {transform_indices = @transform_9, window_bounds = array<i64: 1, 1, 128>}]} {
    %c0 = arith.constant 0 : index
    %c0_0 = arith.constant 0 : index
    %c0_1 = arith.constant 0 : index
    %0 = vector.load %arg1[%c0, %c0_0, %c0_1] : memref<1x16x4xf32, #tpu.memory_space<vmem>>, vector<1x16x4xf32>
    %cst = arith.constant 0.000000e+00 : f32
    %1 = vector.broadcast %cst : f32 to vector<1x1x4xf32>
    %2 = vector.extract_strided_slice %0 {offsets = [0, 0, 0], sizes = [1, 15, 4], strides = [1, 1, 1]} : vector<1x16x4xf32> to vector<1x15x4xf32>
    %3 = tpu.concatenate %1, %2 in 1 : vector<1x1x4xf32>, vector<1x15x4xf32> -> vector<1x16x4xf32>
    %cst_2 = arith.constant 0.000000e+00 : f32
    %4 = vector.broadcast %cst_2 : f32 to vector<1x1x4xf32>
    %5 = vector.extract_strided_slice %0 {offsets = [0, 1, 0], sizes = [1, 15, 4], strides = [1, 1, 1]} : vector<1x16x4xf32> to vector<1x15x4xf32>
    %6 = tpu.concatenate %5, %4 in 1 : vector<1x15x4xf32>, vector<1x1x4xf32> -> vector<1x16x4xf32>
    %7 = tpu.concatenate %3, %0, %6 in 2 : vector<1x16x4xf32>, vector<1x16x4xf32>, vector<1x16x4xf32> -> vector<1x16x12xf32>
    %8 = vector.shape_cast %7 : vector<1x16x12xf32> to vector<16x12xf32>
    %c0_3 = arith.constant 0 : index
    %c0_4 = arith.constant 0 : index
    %9 = vector.load %arg2[%c0_3, %c0_4] : memref<12x64xf32, #tpu.memory_space<vmem>>, vector<12x64xf32>
    %cst_5 = arith.constant dense<0.000000e+00> : vector<16x64xf32>
    %10 = tpu.matmul %8, %9, %cst_5 {dimension_numbers = #tpu.dot_dimension_numbers<[1], [0], [0], [1], [0, 0, 1, 1], [], []>} : vector<16x12xf32>, vector<12x64xf32>, vector<16x64xf32> -> vector<16x64xf32>
    %c0_6 = arith.constant 0 : index
    %c0_7 = arith.constant 0 : index
    %11 = vector.load %arg3[%c0_6, %c0_7] : memref<1x64xf32, #tpu.memory_space<vmem>>, vector<1x64xf32>
    %12 = vector.broadcast %11 : vector<1x64xf32> to vector<16x64xf32>
    %13 = arith.addf %10, %12 : vector<16x64xf32>
    %cst_8 = arith.constant 0.000000e+00 : f32
    %14 = vector.broadcast %cst_8 : f32 to vector<16x64xf32>
    %15 = arith.maximumf %13, %14 : vector<16x64xf32>
    %16 = vector.shape_cast %15 : vector<16x64xf32> to vector<1x16x64xf32>
    %cst_9 = arith.constant 0.000000e+00 : f32
    %17 = vector.broadcast %cst_9 : f32 to vector<1x1x64xf32>
    %18 = vector.extract_strided_slice %16 {offsets = [0, 0, 0], sizes = [1, 15, 64], strides = [1, 1, 1]} : vector<1x16x64xf32> to vector<1x15x64xf32>
    %19 = tpu.concatenate %17, %18 in 1 : vector<1x1x64xf32>, vector<1x15x64xf32> -> vector<1x16x64xf32>
    %cst_10 = arith.constant 0.000000e+00 : f32
    %20 = vector.broadcast %cst_10 : f32 to vector<1x1x64xf32>
    %21 = vector.extract_strided_slice %16 {offsets = [0, 1, 0], sizes = [1, 15, 64], strides = [1, 1, 1]} : vector<1x16x64xf32> to vector<1x15x64xf32>
    %22 = tpu.concatenate %21, %20 in 1 : vector<1x15x64xf32>, vector<1x1x64xf32> -> vector<1x16x64xf32>
    %23 = tpu.concatenate %19, %16, %22 in 2 : vector<1x16x64xf32>, vector<1x16x64xf32>, vector<1x16x64xf32> -> vector<1x16x192xf32>
    %24 = vector.shape_cast %23 : vector<1x16x192xf32> to vector<16x192xf32>
    %c0_11 = arith.constant 0 : index
    %c0_12 = arith.constant 0 : index
    %25 = vector.load %arg4[%c0_11, %c0_12] : memref<192x128xf32, #tpu.memory_space<vmem>>, vector<192x128xf32>
    %cst_13 = arith.constant dense<0.000000e+00> : vector<16x128xf32>
    %26 = tpu.matmul %24, %25, %cst_13 {dimension_numbers = #tpu.dot_dimension_numbers<[1], [0], [0], [1], [0, 0, 1, 1], [], []>} : vector<16x192xf32>, vector<192x128xf32>, vector<16x128xf32> -> vector<16x128xf32>
    %c0_14 = arith.constant 0 : index
    %c0_15 = arith.constant 0 : index
    %27 = vector.load %arg5[%c0_14, %c0_15] : memref<1x128xf32, #tpu.memory_space<vmem>>, vector<1x128xf32>
    %28 = vector.broadcast %27 : vector<1x128xf32> to vector<16x128xf32>
    %29 = arith.addf %26, %28 : vector<16x128xf32>
    %cst_16 = arith.constant 0.000000e+00 : f32
    %30 = vector.broadcast %cst_16 : f32 to vector<16x128xf32>
    %31 = arith.maximumf %29, %30 : vector<16x128xf32>
    %32 = vector.shape_cast %31 : vector<16x128xf32> to vector<1x16x128xf32>
    %cst_17 = arith.constant 0.000000e+00 : f32
    %33 = vector.broadcast %cst_17 : f32 to vector<1x1x128xf32>
    %34 = vector.extract_strided_slice %32 {offsets = [0, 0, 0], sizes = [1, 15, 128], strides = [1, 1, 1]} : vector<1x16x128xf32> to vector<1x15x128xf32>
    %35 = tpu.concatenate %33, %34 in 1 : vector<1x1x128xf32>, vector<1x15x128xf32> -> vector<1x16x128xf32>
    %cst_18 = arith.constant 0.000000e+00 : f32
    %36 = vector.broadcast %cst_18 : f32 to vector<1x1x128xf32>
    %37 = vector.extract_strided_slice %32 {offsets = [0, 1, 0], sizes = [1, 15, 128], strides = [1, 1, 1]} : vector<1x16x128xf32> to vector<1x15x128xf32>
    %38 = tpu.concatenate %37, %36 in 1 : vector<1x15x128xf32>, vector<1x1x128xf32> -> vector<1x16x128xf32>
    %39 = tpu.concatenate %35, %32, %38 in 2 : vector<1x16x128xf32>, vector<1x16x128xf32>, vector<1x16x128xf32> -> vector<1x16x384xf32>
    %40 = vector.shape_cast %39 : vector<1x16x384xf32> to vector<16x384xf32>
    %c0_19 = arith.constant 0 : index
    %c0_20 = arith.constant 0 : index
    %41 = vector.load %arg6[%c0_19, %c0_20] : memref<384x256xf32, #tpu.memory_space<vmem>>, vector<384x256xf32>
    %cst_21 = arith.constant dense<0.000000e+00> : vector<16x256xf32>
    %42 = tpu.matmul %40, %41, %cst_21 {dimension_numbers = #tpu.dot_dimension_numbers<[1], [0], [0], [1], [0, 0, 1, 1], [], []>} : vector<16x384xf32>, vector<384x256xf32>, vector<16x256xf32> -> vector<16x256xf32>
    %c0_22 = arith.constant 0 : index
    %c0_23 = arith.constant 0 : index
    %43 = vector.load %arg7[%c0_22, %c0_23] : memref<1x256xf32, #tpu.memory_space<vmem>>, vector<1x256xf32>
    %44 = vector.broadcast %43 : vector<1x256xf32> to vector<16x256xf32>
    %45 = arith.addf %42, %44 : vector<16x256xf32>
    %cst_24 = arith.constant 0.000000e+00 : f32
    %46 = vector.broadcast %cst_24 : f32 to vector<16x256xf32>
    %47 = arith.maximumf %45, %46 : vector<16x256xf32>
    %48 = vector.shape_cast %47 : vector<16x256xf32> to vector<1x16x256xf32>
    %cst_25 = arith.constant dense<0.000000e+00> : vector<1x256xf32>
    %49 = vector.multi_reduction <add>, %48, %cst_25 [1] : vector<1x16x256xf32> to vector<1x256xf32>
    %c0_26 = arith.constant 0 : index
    %c0_27 = arith.constant 0 : index
    %50 = vector.load %arg8[%c0_26, %c0_27] : memref<256x128xf32, #tpu.memory_space<vmem>>, vector<256x128xf32>
    %cst_28 = arith.constant dense<0.000000e+00> : vector<1x128xf32>
    %51 = tpu.matmul %49, %50, %cst_28 {dimension_numbers = #tpu.dot_dimension_numbers<[1], [0], [0], [1], [0, 0, 1, 1], [], []>} : vector<1x256xf32>, vector<256x128xf32>, vector<1x128xf32> -> vector<1x128xf32>
    %c0_29 = arith.constant 0 : index
    %c0_30 = arith.constant 0 : index
    %52 = vector.load %arg9[%c0_29, %c0_30] : memref<1x128xf32, #tpu.memory_space<vmem>>, vector<1x128xf32>
    %53 = arith.addf %51, %52 : vector<1x128xf32>
    %54 = vector.shape_cast %53 : vector<1x128xf32> to vector<1x1x128xf32>
    %c0_31 = arith.constant 0 : index
    %c0_32 = arith.constant 0 : index
    %c0_33 = arith.constant 0 : index
    %55 = vector.load %arg10[%c0_31, %c0_32, %c0_33] : memref<1x1x128xf32, #tpu.memory_space<vmem>>, vector<1x1x128xf32>
    tpu.vector_store %arg10[%c0_31, %c0_32, %c0_33], %54 {strides = array<i32>} : memref<1x1x128xf32, #tpu.memory_space<vmem>>, vector<1x1x128xf32>,
    return
  }
  func.func @transform_0(%arg0: i32) -> (i32, i32, i32) {
    %c0_i32 = arith.constant 0 : i32
    %c0_i32_0 = arith.constant 0 : i32
    %c0_i32_1 = arith.constant 0 : i32
    return %arg0, %c0_i32, %c0_i32_0 : i32, i32, i32
  }
  func.func @transform_1(%arg0: i32) -> (i32, i32) {
    %c0_i32 = arith.constant 0 : i32
    %c0_i32_0 = arith.constant 0 : i32
    %c0_i32_1 = arith.constant 0 : i32
    return %c0_i32, %c0_i32_0 : i32, i32
  }
  func.func @transform_2(%arg0: i32) -> (i32, i32) {
    %c0_i32 = arith.constant 0 : i32
    %c0_i32_0 = arith.constant 0 : i32
    %c0_i32_1 = arith.constant 0 : i32
    return %c0_i32, %c0_i32_0 : i32, i32
  }
  func.func @transform_3(%arg0: i32) -> (i32, i32) {
    %c0_i32 = arith.constant 0 : i32
    %c0_i32_0 = arith.constant 0 : i32
    %c0_i32_1 = arith.constant 0 : i32
    return %c0_i32, %c0_i32_0 : i32, i32
  }
  func.func @transform_4(%arg0: i32) -> (i32, i32) {
    %c0_i32 = arith.constant 0 : i32
    %c0_i32_0 = arith.constant 0 : i32
    %c0_i32_1 = arith.constant 0 : i32
    return %c0_i32, %c0_i32_0 : i32, i32
  }
  func.func @transform_5(%arg0: i32) -> (i32, i32) {
    %c0_i32 = arith.constant 0 : i32
    %c0_i32_0 = arith.constant 0 : i32
    %c0_i32_1 = arith.constant 0 : i32
    return %c0_i32, %c0_i32_0 : i32, i32
  }
  func.func @transform_6(%arg0: i32) -> (i32, i32) {
    %c0_i32 = arith.constant 0 : i32
    %c0_i32_0 = arith.constant 0 : i32
    %c0_i32_1 = arith.constant 0 : i32
    return %c0_i32, %c0_i32_0 : i32, i32
  }
  func.func @transform_7(%arg0: i32) -> (i32, i32) {
    %c0_i32 = arith.constant 0 : i32
    %c0_i32_0 = arith.constant 0 : i32
    %c0_i32_1 = arith.constant 0 : i32
    return %c0_i32, %c0_i32_0 : i32, i32
  }
  func.func @transform_8(%arg0: i32) -> (i32, i32) {
    %c0_i32 = arith.constant 0 : i32
    %c0_i32_0 = arith.constant 0 : i32
    %c0_i32_1 = arith.constant 0 : i32
    return %c0_i32, %c0_i32_0 : i32, i32
  }
  func.func @transform_9(%arg0: i32) -> (i32, i32, i32) {
    %c0_i32 = arith.constant 0 : i32
    %c0_i32_0 = arith.constant 0 : i32
    %c0_i32_1 = arith.constant 0 : i32
    return %arg0, %c0_i32, %c0_i32_0 : i32, i32, i32
  }
}

</mosaic_0001>

<llo_original>
// kernel: temporal_cnn_forward.1
$region0: #{temporal_cnn_forward.1}
  #allocation0 [shape = 'u32[]', space=smem, size = 0x4, offset = 0x4, fixed_abs, tag = 'smem constant byte address 0x4 - core index']
  #allocation1 [shape = 'u32[144,128]{1,0:T(1,128)}', space=vmem, size = 0x12000, scoped, tag = 'internal scratch']
  %s0 = inlined_call_operand.vmem [shape: f32[2,16,4], index: 0, kind: input, shape index: {}]
  %s1 = inlined_call_operand.vmem [shape: f32[12,64], index: 1, kind: input, shape index: {}]
  %s2 = inlined_call_operand.vmem [shape: f32[1,64], index: 2, kind: input, shape index: {}]
  %s3 = inlined_call_operand.vmem [shape: f32[192,128], index: 3, kind: input, shape index: {}]
  %s4 = inlined_call_operand.vmem [shape: f32[1,128], index: 4, kind: input, shape index: {}]
  %s5 = inlined_call_operand.vmem [shape: f32[384,256], index: 5, kind: input, shape index: {}]
  %s6 = inlined_call_operand.vmem [shape: f32[1,256], index: 6, kind: input, shape index: {}]
  %s7 = inlined_call_operand.vmem [shape: f32[256,128], index: 7, kind: input, shape index: {}]
  %s8 = inlined_call_operand.vmem [shape: f32[1,128], index: 8, kind: input, shape index: {}]
  %s9 = inlined_call_operand.hbm [shape: f32[2,1,128], index: 9, kind: output, shape index: {}]
  %s10 = sld [smem:[#allocation0]]
  $region69: #{temporal_cnn_forward.1} parent=0
    _
  %s12 = ssub.s32 1, %s10
  %s13 = scalar_select 0, %s12, %s10
  $region1: #{temporal_cnn_forward.1} parent=0
    #allocation2 [shape = 'u8[1024]{0}', space=vmem, size = 0x400, scoped, tag = 'output window, operand 0']
    #allocation3 [shape = 's32[2]{0}', space=sflag, size = 0x8, scoped, tag = 'scoped memory for temporal_cnn_forward.1']
    %14 = vsyncpa [#allocation3], 0
    %s15 = scalar_lea.sflag [#allocation3], 1
    %16 = vsyncpa %s15, 0
    loop: start=0, step=1, limit=4
    $region2: #{temporal_cnn_forward.1} parent=1 // loop_pre_header
      _
    $region3: #{temporal_cnn_forward.1} parent=1 // loop_header
      %s18 = sphi 0, %s22
      %p19 = scmp.ge.s32.totalorder %s18, 4
      %s28 = sphi 0, %s30
      %s31 = sphi 0, %s28
      %s32 = sphi 0, %s31
      %s48 = sphi 0, %s32
      %s52 = sphi 0, %s52
      %s54 = sphi 0, %s52
      %s55 = sphi 0, %s54
      %s69 = sphi 0, %s55
      %s73 = sphi 0, %s73
      %s75 = sphi 0, %s73
      %s76 = sphi 0, %s75
      %s90 = sphi 0, %s76
      %s94 = sphi 0, %s94
      %s96 = sphi 0, %s94
      %s97 = sphi 0, %s96
      %s111 = sphi 0, %s97
      %s115 = sphi 0, %s115
      %s117 = sphi 0, %s115
      %s118 = sphi 0, %s117
      %s132 = sphi 0, %s118
      %s136 = sphi 0, %s136
      %s138 = sphi 0, %s136
      %s139 = sphi 0, %s138
      %s153 = sphi 0, %s139
      %s157 = sphi 0, %s157
      %s159 = sphi 0, %s157
      %s160 = sphi 0, %s159
      %s174 = sphi 0, %s160
      %s178 = sphi 0, %s178
      %s180 = sphi 0, %s178
      %s181 = sphi 0, %s180
      %s195 = sphi 0, %s181
      %s199 = sphi 0, %s199
      %s201 = sphi 0, %s199
      %s202 = sphi 0, %s201
      %s216 = sphi 0, %s202
      %s222 = sphi 0, %s224
      %s225 = sphi 0, %s222
      %s226 = sphi 0, %s225
      %s242 = sphi 0, %s226
    $region4: #{temporal_cnn_forward.1} parent=1 // loop_header_branch
      %21 = sbr.rel (%p19) target = $region8
    $region5: #{temporal_cnn_forward.1} parent=1 // loop_body
      %s23 = ssub.s32 %s18, 1
      %s24 = ssub.s32 %s18, 2
      %s25 = sadd.s32 %s18, 1
      %s26 = ssub.s32 %s18, %s25
      %p27 = scmp.eq.s32.totalorder %s26, 0
      %s29 = sadd.s32 %s28, 1
      %s30 = scalar_select %p27, %s28, %s29
      %p33 = pneg %p27
      %p34 = scmp.eq.s32.totalorder %s18, 1
      %p35 = por %p33, %p34
      %p36 = scmp.ne.s32.totalorder %s28, %s31
      %p37 = scmp.eq.s32.totalorder %s18, 0
      %p38 = por %p36, %p37
      %p39 = scmp.ne.s32.totalorder %s28, %s31
      %p40 = scmp.eq.s32.totalorder %s23, 1
      %p41 = por %p39, %p40
      %p42 = scmp.ne.s32.totalorder %s31, %s32
      %p43 = scmp.eq.s32.totalorder %s23, 0
      %p44 = por %p42, %p43
      %p45 = scmp.ne.s32.totalorder %s31, %s32
      %p46 = scmp.eq.s32.totalorder %s24, 1
      %p47 = por %p45, %p46
      %p49 = scmp.ne.s32.totalorder %s32, %s48
      %p50 = scmp.eq.s32.totalorder %s24, 0
      %p51 = por %p49, %p50
      %s53 = sadd.s32 %s52, 1
      %p56 = scmp.eq.s32.totalorder %s18, 1
      %p57 = scmp.ne.s32.totalorder %s52, %s54
      %p58 = scmp.eq.s32.totalorder %s18, 0
      %p59 = por %p57, %p58
      %p60 = scmp.ne.s32.totalorder %s52, %s54
      %p61 = scmp.eq.s32.totalorder %s23, 1
      %p62 = por %p60, %p61
      %p63 = scmp.ne.s32.totalorder %s54, %s55
      %p64 = scmp.eq.s32.totalorder %s23, 0
      %p65 = por %p63, %p64
      %p66 = scmp.ne.s32.totalorder %s54, %s55
      %p67 = scmp.eq.s32.totalorder %s24, 1
      %p68 = por %p66, %p67
      %p70 = scmp.ne.s32.totalorder %s55, %s69
      %p71 = scmp.eq.s32.totalorder %s24, 0
      %p72 = por %p70, %p71
      %s74 = sadd.s32 %s73, 1
      %p77 = scmp.eq.s32.totalorder %s18, 1
      %p78 = scmp.ne.s32.totalorder %s73, %s75
      %p79 = scmp.eq.s32.totalorder %s18, 0
      %p80 = por %p78, %p79
      %p81 = scmp.ne.s32.totalorder %s73, %s75
      %p82 = scmp.eq.s32.totalorder %s23, 1
      %p83 = por %p81, %p82
      %p84 = scmp.ne.s32.totalorder %s75, %s76
      %p85 = scmp.eq.s32.totalorder %s23, 0
      %p86 = por %p84, %p85
      %p87 = scmp.ne.s32.totalorder %s75, %s76
      %p88 = scmp.eq.s32.totalorder %s24, 1
      %p89 = por %p87, %p88
      %p91 = scmp.ne.s32.totalorder %s76, %s90
      %p92 = scmp.eq.s32.totalorder %s24, 0
      %p93 = por %p91, %p92
      %s95 = sadd.s32 %s94, 1
      %p98 = scmp.eq.s32.totalorder %s18, 1
      %p99 = scmp.ne.s32.totalorder %s94, %s96
      %p100 = scmp.eq.s32.totalorder %s18, 0
      %p101 = por %p99, %p100
      %p102 = scmp.ne.s32.totalorder %s94, %s96
      %p103 = scmp.eq.s32.totalorder %s23, 1
      %p104 = por %p102, %p103
      %p105 = scmp.ne.s32.totalorder %s96, %s97
      %p106 = scmp.eq.s32.totalorder %s23, 0
      %p107 = por %p105, %p106
      %p108 = scmp.ne.s32.totalorder %s96, %s97
      %p109 = scmp.eq.s32.totalorder %s24, 1
      %p110 = por %p108, %p109
      %p112 = scmp.ne.s32.totalorder %s97, %s111
      %p113 = scmp.eq.s32.totalorder %s24, 0
      %p114 = por %p112, %p113
      %s116 = sadd.s32 %s115, 1
      %p119 = scmp.eq.s32.totalorder %s18, 1
      %p120 = scmp.ne.s32.totalorder %s115, %s117
      %p121 = scmp.eq.s32.totalorder %s18, 0
      %p122 = por %p120, %p121
      %p123 = scmp.ne.s32.totalorder %s115, %s117
      %p124 = scmp.eq.s32.totalorder %s23, 1
      %p125 = por %p123, %p124
      %p126 = scmp.ne.s32.totalorder %s117, %s118
      %p127 = scmp.eq.s32.totalorder %s23, 0
      %p128 = por %p126, %p127
      %p129 = scmp.ne.s32.totalorder %s117, %s118
      %p130 = scmp.eq.s32.totalorder %s24, 1
      %p131 = por %p129, %p130
      %p133 = scmp.ne.s32.totalorder %s118, %s132
      %p134 = scmp.eq.s32.totalorder %s24, 0
      %p135 = por %p133, %p134
      %s137 = sadd.s32 %s136, 1
      %p140 = scmp.eq.s32.totalorder %s18, 1
      %p141 = scmp.ne.s32.totalorder %s136, %s138
      %p142 = scmp.eq.s32.totalorder %s18, 0
      %p143 = por %p141, %p142
      %p144 = scmp.ne.s32.totalorder %s136, %s138
      %p145 = scmp.eq.s32.totalorder %s23, 1
      %p146 = por %p144, %p145
      %p147 = scmp.ne.s32.totalorder %s138, %s139
      %p148 = scmp.eq.s32.totalorder %s23, 0
      %p149 = por %p147, %p148
      %p150 = scmp.ne.s32.totalorder %s138, %s139
      %p151 = scmp.eq.s32.totalorder %s24, 1
      %p152 = por %p150, %p151
      %p154 = scmp.ne.s32.totalorder %s139, %s153
      %p155 = scmp.eq.s32.totalorder %s24, 0
      %p156 = por %p154, %p155
      %s158 = sadd.s32 %s157, 1
      %p161 = scmp.eq.s32.totalorder %s18, 1
      %p162 = scmp.ne.s32.totalorder %s157, %s159
      %p163 = scmp.eq.s32.totalorder %s18, 0
      %p164 = por %p162, %p163
      %p165 = scmp.ne.s32.totalorder %s157, %s159
      %p166 = scmp.eq.s32.totalorder %s23, 1
      %p167 = por %p165, %p166
      %p168 = scmp.ne.s32.totalorder %s159, %s160
      %p169 = scmp.eq.s32.totalorder %s23, 0
      %p170 = por %p168, %p169
      %p171 = scmp.ne.s32.totalorder %s159, %s160
      %p172 = scmp.eq.s32.totalorder %s24, 1
      %p173 = por %p171, %p172
      %p175 = scmp.ne.s32.totalorder %s160, %s174
      %p176 = scmp.eq.s32.totalorder %s24, 0
      %p177 = por %p175, %p176
      %s179 = sadd.s32 %s178, 1
      %p182 = scmp.eq.s32.totalorder %s18, 1
      %p183 = scmp.ne.s32.totalorder %s178, %s180
      %p184 = scmp.eq.s32.totalorder %s18, 0
      %p185 = por %p183, %p184
      %p186 = scmp.ne.s32.totalorder %s178, %s180
      %p187 = scmp.eq.s32.totalorder %s23, 1
      %p188 = por %p186, %p187
      %p189 = scmp.ne.s32.totalorder %s180, %s181
      %p190 = scmp.eq.s32.totalorder %s23, 0
      %p191 = por %p189, %p190
      %p192 = scmp.ne.s32.totalorder %s180, %s181
      %p193 = scmp.eq.s32.totalorder %s24, 1
      %p194 = por %p192, %p193
      %p196 = scmp.ne.s32.totalorder %s181, %s195
      %p197 = scmp.eq.s32.totalorder %s24, 0
      %p198 = por %p196, %p197
      %s200 = sadd.s32 %s199, 1
      %p203 = scmp.eq.s32.totalorder %s18, 1
      %p204 = scmp.ne.s32.totalorder %s199, %s201
      %p205 = scmp.eq.s32.totalorder %s18, 0
      %p206 = por %p204, %p205
      %p207 = scmp.ne.s32.totalorder %s199, %s201
      %p208 = scmp.eq.s32.totalorder %s23, 1
      %p209 = por %p207, %p208
      %p210 = scmp.ne.s32.totalorder %s201, %s202
      %p211 = scmp.eq.s32.totalorder %s23, 0
      %p212 = por %p210, %p211
      %p213 = scmp.ne.s32.totalorder %s201, %s202
      %p214 = scmp.eq.s32.totalorder %s24, 1
      %p215 = por %p213, %p214
      %p217 = scmp.ne.s32.totalorder %s202, %s216
      %p218 = scmp.eq.s32.totalorder %s24, 0
      %p219 = por %p217, %p218
      %s220 = ssub.s32 %s18, %s25
      %p221 = scmp.eq.s32.totalorder %s220, 0
      %s223 = sadd.s32 %s222, 1
      %s224 = scalar_select %p221, %s222, %s223
      %p227 = pneg %p221
      %p228 = scmp.eq.s32.totalorder %s18, 1
      %p229 = por %p227, %p228
      %p230 = scmp.ne.s32.totalorder %s222, %s225
      %p231 = scmp.eq.s32.totalorder %s18, 0
      %p232 = por %p230, %p231
      %p233 = scmp.ne.s32.totalorder %s222, %s225
      %p234 = scmp.eq.s32.totalorder %s23, 1
      %p235 = por %p233, %p234
      %p236 = scmp.ne.s32.totalorder %s225, %s226
      %p237 = scmp.eq.s32.totalorder %s23, 0
      %p238 = por %p236, %p237
      %p239 = scmp.ne.s32.totalorder %s225, %s226
      %p240 = scmp.eq.s32.totalorder %s24, 1
      %p241 = por %p239, %p240
      %p243 = scmp.ne.s32.totalorder %s226, %s242
      %p244 = scmp.eq.s32.totalorder %s24, 0
      %p245 = por %p243, %p244
      %p246 = scmp.le.s32.totalorder 1, %s18
      %p247 = scmp.lt.s32.totalorder %s18, 3
      %p248 = pnand %p246, %p247
      %p249 = pneg %p248
      // Predicated region
      $region9: #{temporal_cnn_forward.1} parent=5 // pred_check
        _
      $region10: #{temporal_cnn_forward.1} parent=5 // pred_check_branch
        %251 = sbr.rel (%p248) target = $region12
      $region11: #{temporal_cnn_forward.1} parent=5 // pred_region
        %s252 = ssub.s32 %s18, 1
        // Predicated region
        $region13: #{temporal_cnn_forward.1} parent=11 // pred_check
          %p253 = pneg %p65
        $region14: #{temporal_cnn_forward.1} parent=11 // pred_check_branch
          %255 = sbr.rel (%p253) target = $region16
        $region15: #{temporal_cnn_forward.1} parent=11 // pred_region
          _
        $region16: #{temporal_cnn_forward.1} parent=11 // pred_fallthru
          _
        // Predicated region
        $region17: #{temporal_cnn_forward.1} parent=11 // pred_check
          %p256 = pneg %p86
        $region18: #{temporal_cnn_forward.1} parent=11 // pred_check_branch
          %258 = sbr.rel (%p256) target = $region20
        $region19: #{temporal_cnn_forward.1} parent=11 // pred_region
          _
        $region20: #{temporal_cnn_forward.1} parent=11 // pred_fallthru
          _
        // Predicated region
        $region21: #{temporal_cnn_forward.1} parent=11 // pred_check
          %p259 = pneg %p107
        $region22: #{temporal_cnn_forward.1} parent=11 // pred_check_branch
          %261 = sbr.rel (%p259) target = $region24
        $region23: #{temporal_cnn_forward.1} parent=11 // pred_region
          _
        $region24: #{temporal_cnn_forward.1} parent=11 // pred_fallthru
          _
        // Predicated region
        $region25: #{temporal_cnn_forward.1} parent=11 // pred_check
          %p262 = pneg %p128
        $region26: #{temporal_cnn_forward.1} parent=11 // pred_check_branch
          %264 = sbr.rel (%p262) target = $region28
        $region27: #{temporal_cnn_forward.1} parent=11 // pred_region
          _
        $region28: #{temporal_cnn_forward.1} parent=11 // pred_fallthru
          _
        // Predicated region
        $region29: #{temporal_cnn_forward.1} parent=11 // pred_check
          %p265 = pneg %p149
        $region30: #{temporal_cnn_forward.1} parent=11 // pred_check_branch
          %267 = sbr.rel (%p265) target = $region32
        $region31: #{temporal_cnn_forward.1} parent=11 // pred_region
          _
        $region32: #{temporal_cnn_forward.1} parent=11 // pred_fallthru
          _
        // Predicated region
        $region33: #{temporal_cnn_forward.1} parent=11 // pred_check
          %p268 = pneg %p170
        $region34: #{temporal_cnn_forward.1} parent=11 // pred_check_branch
          %270 = sbr.rel (%p268) target = $region36
        $region35: #{temporal_cnn_forward.1} parent=11 // pred_region
          _
        $region36: #{temporal_cnn_forward.1} parent=11 // pred_fallthru
          _
        // Predicated region
        $region37: #{temporal_cnn_forward.1} parent=11 // pred_check
          %p271 = pneg %p191
        $region38: #{temporal_cnn_forward.1} parent=11 // pred_check_branch
          %273 = sbr.rel (%p271) target = $region40
        $region39: #{temporal_cnn_forward.1} parent=11 // pred_region
          _
        $region40: #{temporal_cnn_forward.1} parent=11 // pred_fallthru
          _
        // Predicated region
        $region41: #{temporal_cnn_forward.1} parent=11 // pred_check
          %p274 = pneg %p212
        $region42: #{temporal_cnn_forward.1} parent=11 // pred_check_branch
          %276 = sbr.rel (%p274) target = $region44
        $region43: #{temporal_cnn_forward.1} parent=11 // pred_region
          _
        $region44: #{temporal_cnn_forward.1} parent=11 // pred_fallthru
          _
      $region12: #{temporal_cnn_forward.1} parent=5 // pred_fallthru
        _
      %p277 = scmp.lt.s32.totalorder %s18, 2
      // Predicated region
      $region45: #{temporal_cnn_forward.1} parent=5 // pred_check
        %p278 = pneg %p277
      $region46: #{temporal_cnn_forward.1} parent=5 // pred_check_branch
        %280 = sbr.rel (%p278) target = $region48
      $region47: #{temporal_cnn_forward.1} parent=5 // pred_region
        // Predicated region
        $region49: #{temporal_cnn_forward.1} parent=47 // pred_check
          %p281 = pneg %p38
        $region50: #{temporal_cnn_forward.1} parent=47 // pred_check_branch
          %283 = sbr.rel (%p281) target = $region52
        $region51: #{temporal_cnn_forward.1} parent=47 // pred_region
          %p284 = scmp.lt.s32.totalorder %s18, 1
          %s285 = scalar_select %p284, %s18, 1
          %s286 = smul.addr %s285, 2
          %s287 = smul.addr %s286, 8
          %s288 = scalar_lea.vmem %s0, %s287
        $region52: #{temporal_cnn_forward.1} parent=47 // pred_fallthru
          _
      $region48: #{temporal_cnn_forward.1} parent=5 // pred_fallthru
        _
      %p289 = scmp.le.s32.totalorder 1, %s18
      %p290 = scmp.lt.s32.totalorder %s18, 3
      %p291 = pnand %p289, %p290
      %p292 = pneg %p291
      // Predicated region
      $region53: #{temporal_cnn_forward.1} parent=5 // pred_check
        _
      $region54: #{temporal_cnn_forward.1} parent=5 // pred_check_branch
        %294 = sbr.rel (%p291) target = $region56
      $region55: #{temporal_cnn_forward.1} parent=5 // pred_region
        %s295 = ssub.s32 %s18, 1
        %p296 = scmp.lt.s32.totalorder %s23, 1
        %s297 = scalar_select %p296, %s23, 1
        %s298 = smul.addr %s297, 2
        %s299 = smul.addr %s298, 8
        %s300 = scalar_lea.vmem %s0, %s299
        %p301 = pneg %p44
        %p302 = pneg %p41
        %p303 = pneg %p65
        %p304 = pneg %p62
        %p305 = pneg %p86
        %p306 = pneg %p83
        %p307 = pneg %p107
        %p308 = pneg %p104
        %p309 = pneg %p128
        %p310 = pneg %p125
        %p311 = pneg %p149
        %p312 = pneg %p146
        %p313 = pneg %p170
        %p314 = pneg %p167
        %p315 = pneg %p191
        %p316 = pneg %p188
        %p317 = pneg %p212
        %p318 = pneg %p209
        %p319 = pneg %p238
        %p320 = pneg %p235
        %s321 = sand.u32 %s225, 1
        %s322 = scalar_lea.sflag [#allocation3], %s321
        %s323 = sand.u32 %s225, 1
        %s324 = scalar_lea.vmem [#allocation2], %s323
        %p325 = scmp.lt.s32.totalorder %s23, 1
        %s326 = scalar_select %p325, %s23, 1
        %s327 = smul.addr %s326, 2
        %s328 = smul.addr %s327, 8
        %s329 = scalar_lea.vmem %s0, %s328
        %v330 = vld [vmem:[%s329] sm:$0xff]
        %v331 = vld [vmem:[%s329 + $0x8] sm:$0xff]
        %vm334 = vcmask 1040384
        %v335 = vrot.slane %v330, 7
        %v336 = vrot.slane %v331, 7
        %v337 = vsel %vm334, %v335, %v336
        %v340 = vsel %vm334, 0.0, %v335
        %vm341 = vcmask 1046528
        %v342 = vrot.slane %v330, 1
        %v343 = vrot.slane %v331, 1
        %v344 = vsel %vm341, %v342, %v343
        %v346 = vsel %vm341, %v343, 0.0
        %347 = vrot.lane.b32.xlu0 %v330, 4
        %v348 = vpop.permute.xlu0 %347
        %349 = vrot.lane.b32.xlu0 %v331, 4
        %v350 = vpop.permute.xlu0 %349
        %354 = vrot.lane.b32.xlu0 %v344, 8
        %v355 = vpop.permute.xlu0 %354
        %356 = vrot.lane.b32.xlu0 %v346, 8
        %v357 = vpop.permute.xlu0 %356
        %vm360 = vcmask 31744
        %v361 = vsel %vm360, %v340, %v348
        %v362 = vsel %vm360, %v337, %v350
        %vm363 = vcmask 64512
        %v364 = vsel %vm363, %v361, %v355
        %v365 = vsel %vm363, %v362, %v357
        %v366 = vld [vmem:[%s1] sm:$0xff]
        %v367 = vld [vmem:[%s1 + $0x8] sm:$0xf]
        %v368 = vld [vmem:[%s2] sm:$0x1]
        %v370 = vlaneseq
        %v371 = vshrl.u32 %v370, 7
        %v372 = vsub.s32 0, %v371
        %v373 = vrot.slane %v368, %v372
        %vm375 = vcmask 97280
        %v377 = vsel %vm375, %v364, 0
        %v380 = vsel %vm375, %v365, 0
        %vm382 = vcmask 1043456
        %v384 = vsel %vm382, %v367, 0
        %386 = vmatprep.subr.mxu0 0.0
        %387 = vmatpush1.msra.mxu0 0.0
        %388 = vmatprep.subr.mxu0 0.0
        %389 = vmatpush1.msra.mxu0 0.0
        %390 = vmatprep.subr.mxu0 0.0
        %391 = vmatpush1.msra.mxu0 0.0
        %392 = vmatprep.subr.mxu0 0.0
        %393 = vmatpush1.msra.mxu0 0.0
        %394 = vmatprep.subr.mxu0 0.0
        %395 = vmatpush1.msra.mxu0 0.0
        %396 = vmatprep.subr.mxu0 0.0
        %397 = vmatpush1.msra.mxu0 0.0
        %398 = vmatprep.subr.mxu0 0.0
        %399 = vmatpush1.msra.mxu0 0.0
        %400 = vmatprep.subr.mxu0 0.0
        %401 = vmatpush1.msra.mxu0 0.0
        %402 = vmatprep.subr.mxu0 0.0
        %403 = vmatpush1.msra.mxu0 0.0
        %404 = vmatprep.subr.mxu0 0.0
        %405 = vmatpush1.msra.mxu0 0.0
        %406 = vmatprep.subr.mxu0 0.0
        %407 = vmatpush1.msra.mxu0 0.0
        %408 = vmatprep.subr.mxu0 0.0
        %409 = vmatpush1.msra.mxu0 0.0
        %410 = vmatprep.subr.mxu0 0.0
        %411 = vmatpush1.msra.mxu0 0.0
        %412 = vmatprep.subr.mxu0 0.0
        %413 = vmatpush1.msra.mxu0 0.0
        %414 = vmatprep.subr.mxu0 0.0
        %415 = vmatpush1.msra.mxu0 %v384
        %416 = vmatprep.subr.mxu0 0.0
        %417 = vmatpush1.msra.mxu0 %v366
        %418 = vmatprep.subr.mxu0 0.0
        %419 = vmatpush2.msra.mxu0 0.0
        %420 = vmatprep.subr.mxu0 0.0
        %421 = vmatpush2.msra.mxu0 0.0
        %422 = vmatprep.subr.mxu0 0.0
        %423 = vmatpush2.msra.mxu0 0.0
        %424 = vmatprep.subr.mxu0 0.0
        %425 = vmatpush2.msra.mxu0 0.0
        %426 = vmatprep.subr.mxu0 0.0
        %427 = vmatpush2.msra.mxu0 0.0
        %428 = vmatprep.subr.mxu0 0.0
        %429 = vmatpush2.msra.mxu0 0.0
        %430 = vmatprep.subr.mxu0 0.0
        %431 = vmatpush2.msra.mxu0 0.0
        %432 = vmatprep.subr.mxu0 0.0
        %433 = vmatpush2.msra.mxu0 0.0
        %434 = vmatprep.subr.mxu0 0.0
        %435 = vmatpush2.msra.mxu0 0.0
        %436 = vmatprep.subr.mxu0 0.0
        %437 = vmatpush2.msra.mxu0 0.0
        %438 = vmatprep.subr.mxu0 0.0
        %439 = vmatpush2.msra.mxu0 0.0
        %440 = vmatprep.subr.mxu0 0.0
        %441 = vmatpush2.msra.mxu0 0.0
        %442 = vmatprep.subr.mxu0 0.0
        %443 = vmatpush2.msra.mxu0 0.0
        %444 = vmatprep.subr.mxu0 0.0
        %445 = vmatpush2.msra.mxu0 0.0
        %446 = vmatprep.subr.mxu0 0.0
        %447 = vmatpush2.msra.mxu0 0.0
        %448 = vmatprep.subr.mxu0 0.0
        %449 = vmatpush2.msra.mxu0 0.0
        %450 = vmatprep.mubr.f32.mxu0 0.0
        %451 = vmatmul.mubr.f32.gmra.mxu0 %v377
        %v452 = vpop.f32.mrf.mxu0
        %v453 = vadd.f32 %v373, %v452
        %v454 = vpop.f32.mrf.mxu0
        %455 = vmatprep.mubr.f32.mxu0 0.0
        %456 = vmatmul.mubr.f32.gmra.mxu0 %v380
        %v457 = vpop.f32.mrf.mxu0
        %v458 = vadd.f32 %v373, %v457
        %v459 = vpop.f32.mrf.mxu0
        %460 = vdwg.mxu0
        %v461 = vmax.f32 %v453, 0.0
        %v462 = vmax.f32 %v458, 0.0
        %v465 = vrot.slane %v461, 7
        %v466 = vrot.slane %v462, 7
        %v467 = vsel %vm334, %v465, %v466
        %v470 = vsel %vm334, 0.0, %v465
        %v471 = vrot.slane %v461, 1
        %v472 = vrot.slane %v462, 1
        %v473 = vsel %vm341, %v471, %v472
        %v475 = vsel %vm341, %v472, 0.0
        %476 = vrot.lane.b32.xlu0 %v461, 64
        %v477 = vpop.permute.xlu0 %476
        %478 = vrot.lane.b32.xlu0 %v462, 64
        %v479 = vpop.permute.xlu0 %478
        %vm482 = vcmask 523264
        %v483 = vsel %vm482, %v470, %v477
        %v484 = vsel %vm482, %v467, %v479
        %v485 = vld [vmem:[%s3] sm:$0xff]
        %v486 = vld [vmem:[%s3 + $0x8] sm:$0xff]
        %v487 = vld [vmem:[%s3 + $0x10] sm:$0xff]
        %v488 = vld [vmem:[%s3 + $0x18] sm:$0xff]
        %v489 = vld [vmem:[%s3 + $0x20] sm:$0xff]
        %v490 = vld [vmem:[%s3 + $0x28] sm:$0xff]
        %v491 = vld [vmem:[%s3 + $0x30] sm:$0xff]
        %v492 = vld [vmem:[%s3 + $0x38] sm:$0xff]
        %v493 = vld [vmem:[%s3 + $0x40] sm:$0xff]
        %v494 = vld [vmem:[%s3 + $0x48] sm:$0xff]
        %v495 = vld [vmem:[%s3 + $0x50] sm:$0xff]
        %v496 = vld [vmem:[%s3 + $0x58] sm:$0xff]
        %v497 = vld [vmem:[%s3 + $0x60] sm:$0xff]
        %v498 = vld [vmem:[%s3 + $0x68] sm:$0xff]
        %v499 = vld [vmem:[%s3 + $0x70] sm:$0xff]
        %v500 = vld [vmem:[%s3 + $0x78] sm:$0xff]
        %v501 = vld [vmem:[%s3 + $0x80] sm:$0xff]
        %v502 = vld [vmem:[%s3 + $0x88] sm:$0xff]
        %v503 = vld [vmem:[%s3 + $0x90] sm:$0xff]
        %v504 = vld [vmem:[%s3 + $0x98] sm:$0xff]
        %v505 = vld [vmem:[%s3 + $0xa0] sm:$0xff]
        %v506 = vld [vmem:[%s3 + $0xa8] sm:$0xff]
        %v507 = vld [vmem:[%s3 + $0xb0] sm:$0xff]
        %v508 = vld [vmem:[%s3 + $0xb8] sm:$0xff]
        %v509 = vld [vmem:[%s4] sm:$0x1]
        %v511 = vlaneseq
        %v512 = vshrl.u32 %v511, 7
        %v513 = vsub.s32 0, %v512
        %v514 = vrot.slane %v509, %v513
        %v516 = vsel %vm482, %v473, 0
        %v519 = vsel %vm482, %v475, 0
        %521 = vmatprep.subr.mxu0 0.0
        %522 = vmatpush1.msra.mxu0 %v500
        %523 = vmatprep.subr.mxu0 0.0
        %524 = vmatpush1.msra.mxu0 %v499
        %525 = vmatprep.subr.mxu0 0.0
        %526 = vmatpush1.msra.mxu0 %v498
        %527 = vmatprep.subr.mxu0 0.0
        %528 = vmatpush1.msra.mxu0 %v497
        %529 = vmatprep.subr.mxu0 0.0
        %530 = vmatpush1.msra.mxu0 %v496
        %531 = vmatprep.subr.mxu0 0.0
        %532 = vmatpush1.msra.mxu0 %v495
        %533 = vmatprep.subr.mxu0 0.0
        %534 = vmatpush1.msra.mxu0 %v494
        %535 = vmatprep.subr.mxu0 0.0
        %536 = vmatpush1.msra.mxu0 %v493
        %537 = vmatprep.subr.mxu0 0.0
        %538 = vmatpush1.msra.mxu0 %v492
        %539 = vmatprep.subr.mxu0 0.0
        %540 = vmatpush1.msra.mxu0 %v491
        %541 = vmatprep.subr.mxu0 0.0
        %542 = vmatpush1.msra.mxu0 %v490
        %543 = vmatprep.subr.mxu0 0.0
        %544 = vmatpush1.msra.mxu0 %v489
        %545 = vmatprep.subr.mxu0 0.0
        %546 = vmatpush1.msra.mxu0 %v488
        %547 = vmatprep.subr.mxu0 0.0
        %548 = vmatpush1.msra.mxu0 %v487
        %549 = vmatprep.subr.mxu0 0.0
        %550 = vmatpush1.msra.mxu0 %v486
        %551 = vmatprep.subr.mxu0 0.0
        %552 = vmatpush1.msra.mxu0 %v485
        %553 = vmatprep.subr.mxu0 0.0
        %554 = vmatpush2.msra.mxu0 0.0
        %555 = vmatprep.subr.mxu0 0.0
        %556 = vmatpush2.msra.mxu0 0.0
        %557 = vmatprep.subr.mxu0 0.0
        %558 = vmatpush2.msra.mxu0 0.0
        %559 = vmatprep.subr.mxu0 0.0
        %560 = vmatpush2.msra.mxu0 0.0
        %561 = vmatprep.subr.mxu0 0.0
        %562 = vmatpush2.msra.mxu0 0.0
        %563 = vmatprep.subr.mxu0 0.0
        %564 = vmatpush2.msra.mxu0 0.0
        %565 = vmatprep.subr.mxu0 0.0
        %566 = vmatpush2.msra.mxu0 0.0
        %567 = vmatprep.subr.mxu0 0.0
        %568 = vmatpush2.msra.mxu0 0.0
        %569 = vmatprep.subr.mxu0 0.0
        %570 = vmatpush2.msra.mxu0 %v508
        %571 = vmatprep.subr.mxu0 0.0
        %572 = vmatpush2.msra.mxu0 %v507
        %573 = vmatprep.subr.mxu0 0.0
        %574 = vmatpush2.msra.mxu0 %v506
        %575 = vmatprep.subr.mxu0 0.0
        %576 = vmatpush2.msra.mxu0 %v505
        %577 = vmatprep.subr.mxu0 0.0
        %578 = vmatpush2.msra.mxu0 %v504
        %579 = vmatprep.subr.mxu0 0.0
        %580 = vmatpush2.msra.mxu0 %v503
        %581 = vmatprep.subr.mxu0 0.0
        %582 = vmatpush2.msra.mxu0 %v502
        %583 = vmatprep.subr.mxu0 0.0
        %584 = vmatpush2.msra.mxu0 %v501
        %585 = vmatprep.mubr.f32.mxu0 %v516
        %586 = vmatmul.mubr.f32.gmra.mxu0 %v483
        %v587 = vpop.f32.mrf.mxu0
        %v588 = vadd.f32 %v514, %v587
        %v589 = vpop.f32.mrf.mxu0
        %590 = vmatprep.mubr.f32.mxu0 %v519
        %591 = vmatmul.mubr.f32.gmra.mxu0 %v484
        %v592 = vpop.f32.mrf.mxu0
        %v593 = vadd.f32 %v514, %v592
        %v594 = vpop.f32.mrf.mxu0
        %595 = vdwg.mxu0
        %v596 = vmax.f32 %v588, 0.0
        %v597 = vmax.f32 %v593, 0.0
        %v600 = vrot.slane %v596, 7
        %v601 = vrot.slane %v597, 7
        %v602 = vsel %vm334, %v600, %v601
        %v605 = vsel %vm334, 0.0, %v600
        %v606 = vrot.slane %v596, 1
        %v607 = vrot.slane %v597, 1
        %v608 = vsel %vm341, %v606, %v607
        %v611 = vsel %vm341, %v607, 0.0
        %v612 = vld [vmem:[%s5] sm:$0xff]
        %v613 = vld [vmem:[%s5 + $0x8] sm:$0xff]
        %v614 = vld [vmem:[%s5 + $0x10] sm:$0xff]
        %v615 = vld [vmem:[%s5 + $0x18] sm:$0xff]
        %v616 = vld [vmem:[%s5 + $0x20] sm:$0xff]
        %v617 = vld [vmem:[%s5 + $0x28] sm:$0xff]
        %v618 = vld [vmem:[%s5 + $0x30] sm:$0xff]
        %v619 = vld [vmem:[%s5 + $0x38] sm:$0xff]
        %v620 = vld [vmem:[%s5 + $0x40] sm:$0xff]
        %v621 = vld [vmem:[%s5 + $0x48] sm:$0xff]
        %v622 = vld [vmem:[%s5 + $0x50] sm:$0xff]
        %v623 = vld [vmem:[%s5 + $0x58] sm:$0xff]
        %v624 = vld [vmem:[%s5 + $0x60] sm:$0xff]
        %v625 = vld [vmem:[%s5 + $0x68] sm:$0xff]
        %v626 = vld [vmem:[%s5 + $0x70] sm:$0xff]
        %v627 = vld [vmem:[%s5 + $0x78] sm:$0xff]
        %v628 = vld [vmem:[%s5 + $0x80] sm:$0xff]
        %v629 = vld [vmem:[%s5 + $0x88] sm:$0xff]
        %v630 = vld [vmem:[%s5 + $0x90] sm:$0xff]
        %v631 = vld [vmem:[%s5 + $0x98] sm:$0xff]
        %v632 = vld [vmem:[%s5 + $0xa0] sm:$0xff]
        %v633 = vld [vmem:[%s5 + $0xa8] sm:$0xff]
        %v634 = vld [vmem:[%s5 + $0xb0] sm:$0xff]
        %v635 = vld [vmem:[%s5 + $0xb8] sm:$0xff]
        %v636 = vld [vmem:[%s5 + $0xc0] sm:$0xff]
        %v637 = vld [vmem:[%s5 + $0xc8] sm:$0xff]
        %v638 = vld [vmem:[%s5 + $0xd0] sm:$0xff]
        %v639 = vld [vmem:[%s5 + $0xd8] sm:$0xff]
        %v640 = vld [vmem:[%s5 + $0xe0] sm:$0xff]
        %v641 = vld [vmem:[%s5 + $0xe8] sm:$0xff]
        %v642 = vld [vmem:[%s5 + $0xf0] sm:$0xff]
        %v643 = vld [vmem:[%s5 + $0xf8] sm:$0xff]
        %v644 = vld [vmem:[%s5 + $0x100] sm:$0xff]
        %v645 = vld [vmem:[%s5 + $0x108] sm:$0xff]
        %v646 = vld [vmem:[%s5 + $0x110] sm:$0xff]
        %v647 = vld [vmem:[%s5 + $0x118] sm:$0xff]
        %v648 = vld [vmem:[%s5 + $0x120] sm:$0xff]
        %v649 = vld [vmem:[%s5 + $0x128] sm:$0xff]
        %v650 = vld [vmem:[%s5 + $0x130] sm:$0xff]
        %v651 = vld [vmem:[%s5 + $0x138] sm:$0xff]
        %v652 = vld [vmem:[%s5 + $0x140] sm:$0xff]
        %v653 = vld [vmem:[%s5 + $0x148] sm:$0xff]
        %v654 = vld [vmem:[%s5 + $0x150] sm:$0xff]
        %v655 = vld [vmem:[%s5 + $0x158] sm:$0xff]
        %v656 = vld [vmem:[%s5 + $0x160] sm:$0xff]
        %v657 = vld [vmem:[%s5 + $0x168] sm:$0xff]
        %v658 = vld [vmem:[%s5 + $0x170] sm:$0xff]
        %v659 = vld [vmem:[%s5 + $0x178] sm:$0xff]
        %v660 = vld [vmem:[%s5 + $0x180] sm:$0xff]
        %v661 = vld [vmem:[%s5 + $0x188] sm:$0xff]
        %v662 = vld [vmem:[%s5 + $0x190] sm:$0xff]
        %v663 = vld [vmem:[%s5 + $0x198] sm:$0xff]
        %v664 = vld [vmem:[%s5 + $0x1a0] sm:$0xff]
        %v665 = vld [vmem:[%s5 + $0x1a8] sm:$0xff]
        %v666 = vld [vmem:[%s5 + $0x1b0] sm:$0xff]
        %v667 = vld [vmem:[%s5 + $0x1b8] sm:$0xff]
        %v668 = vld [vmem:[%s5 + $0x1c0] sm:$0xff]
        %v669 = vld [vmem:[%s5 + $0x1c8] sm:$0xff]
        %v670 = vld [vmem:[%s5 + $0x1d0] sm:$0xff]
        %v671 = vld [vmem:[%s5 + $0x1d8] sm:$0xff]
        %v672 = vld [vmem:[%s5 + $0x1e0] sm:$0xff]
        %v673 = vld [vmem:[%s5 + $0x1e8] sm:$0xff]
        %v674 = vld [vmem:[%s5 + $0x1f0] sm:$0xff]
        %v675 = vld [vmem:[%s5 + $0x1f8] sm:$0xff]
        %v676 = vld [vmem:[%s5 + $0x200] sm:$0xff]
        %v677 = vld [vmem:[%s5 + $0x208] sm:$0xff]
        %v678 = vld [vmem:[%s5 + $0x210] sm:$0xff]
        %v679 = vld [vmem:[%s5 + $0x218] sm:$0xff]
        %v680 = vld [vmem:[%s5 + $0x220] sm:$0xff]
        %v681 = vld [vmem:[%s5 + $0x228] sm:$0xff]
        %v682 = vld [vmem:[%s5 + $0x230] sm:$0xff]
        %v683 = vld [vmem:[%s5 + $0x238] sm:$0xff]
        %v684 = vld [vmem:[%s5 + $0x240] sm:$0xff]
        %v685 = vld [vmem:[%s5 + $0x248] sm:$0xff]
        %v686 = vld [vmem:[%s5 + $0x250] sm:$0xff]
        %v687 = vld [vmem:[%s5 + $0x258] sm:$0xff]
        %v688 = vld [vmem:[%s5 + $0x260] sm:$0xff]
        %v689 = vld [vmem:[%s5 + $0x268] sm:$0xff]
        %v690 = vld [vmem:[%s5 + $0x270] sm:$0xff]
        %v691 = vld [vmem:[%s5 + $0x278] sm:$0xff]
        %v692 = vld [vmem:[%s5 + $0x280] sm:$0xff]
        %v693 = vld [vmem:[%s5 + $0x288] sm:$0xff]
        %v694 = vld [vmem:[%s5 + $0x290] sm:$0xff]
        %v695 = vld [vmem:[%s5 + $0x298] sm:$0xff]
        %v696 = vld [vmem:[%s5 + $0x2a0] sm:$0xff]
        %v697 = vld [vmem:[%s5 + $0x2a8] sm:$0xff]
        %v698 = vld [vmem:[%s5 + $0x2b0] sm:$0xff]
        %v699 = vld [vmem:[%s5 + $0x2b8] sm:$0xff]
        %v700 = vld [vmem:[%s5 + $0x2c0] sm:$0xff]
        %v701 = vld [vmem:[%s5 + $0x2c8] sm:$0xff]
        %v702 = vld [vmem:[%s5 + $0x2d0] sm:$0xff]
        %v703 = vld [vmem:[%s5 + $0x2d8] sm:$0xff]
        %v704 = vld [vmem:[%s5 + $0x2e0] sm:$0xff]
        %v705 = vld [vmem:[%s5 + $0x2e8] sm:$0xff]
        %v706 = vld [vmem:[%s5 + $0x2f0] sm:$0xff]
        %v707 = vld [vmem:[%s5 + $0x2f8] sm:$0xff]
        %v708 = vld [vmem:[%s6] sm:$0x3]
        %v710 = vlaneseq
        %v711 = vshrl.u32 %v710, 7
        %v712 = vsub.s32 0, %v711
        %v713 = vrot.slane %v708, %v712
        %v714 = vlaneseq
        %v715 = vshrl.u32 %v714, 7
        %v716 = vsub.s32 1, %v715
        %v717 = vrot.slane %v708, %v716
        %720 = vmatprep.subr.mxu0 %v643
        %721 = vmatpush1.msra.mxu0 %v642
        %722 = vmatprep.subr.mxu0 %v641
        %723 = vmatpush1.msra.mxu0 %v640
        %724 = vmatprep.subr.mxu0 %v639
        %725 = vmatpush1.msra.mxu0 %v638
        %726 = vmatprep.subr.mxu0 %v637
        %727 = vmatpush1.msra.mxu0 %v636
        %728 = vmatprep.subr.mxu0 %v635
        %729 = vmatpush1.msra.mxu0 %v634
        %730 = vmatprep.subr.mxu0 %v633
        %731 = vmatpush1.msra.mxu0 %v632
        %732 = vmatprep.subr.mxu0 %v631
        %733 = vmatpush1.msra.mxu0 %v630
        %734 = vmatprep.subr.mxu0 %v629
        %735 = vmatpush1.msra.mxu0 %v628
        %736 = vmatprep.subr.mxu0 %v627
        %737 = vmatpush1.msra.mxu0 %v626
        %738 = vmatprep.subr.mxu0 %v625
        %739 = vmatpush1.msra.mxu0 %v624
        %740 = vmatprep.subr.mxu0 %v623
        %741 = vmatpush1.msra.mxu0 %v622
        %742 = vmatprep.subr.mxu0 %v621
        %743 = vmatpush1.msra.mxu0 %v620
        %744 = vmatprep.subr.mxu0 %v619
        %745 = vmatpush1.msra.mxu0 %v618
        %746 = vmatprep.subr.mxu0 %v617
        %747 = vmatpush1.msra.mxu0 %v616
        %748 = vmatprep.subr.mxu0 %v615
        %749 = vmatpush1.msra.mxu0 %v614
        %750 = vmatprep.subr.mxu0 %v613
        %751 = vmatpush1.msra.mxu0 %v612
        %752 = vmatprep.subr.mxu0 %v675
        %753 = vmatpush2.msra.mxu0 %v674
        %754 = vmatprep.subr.mxu0 %v673
        %755 = vmatpush2.msra.mxu0 %v672
        %756 = vmatprep.subr.mxu0 %v671
        %757 = vmatpush2.msra.mxu0 %v670
        %758 = vmatprep.subr.mxu0 %v669
        %759 = vmatpush2.msra.mxu0 %v668
        %760 = vmatprep.subr.mxu0 %v667
        %761 = vmatpush2.msra.mxu0 %v666
        %762 = vmatprep.subr.mxu0 %v665
        %763 = vmatpush2.msra.mxu0 %v664
        %764 = vmatprep.subr.mxu0 %v663
        %765 = vmatpush2.msra.mxu0 %v662
        %766 = vmatprep.subr.mxu0 %v661
        %767 = vmatpush2.msra.mxu0 %v660
        %768 = vmatprep.subr.mxu0 %v659
        %769 = vmatpush2.msra.mxu0 %v658
        %770 = vmatprep.subr.mxu0 %v657
        %771 = vmatpush2.msra.mxu0 %v656
        %772 = vmatprep.subr.mxu0 %v655
        %773 = vmatpush2.msra.mxu0 %v654
        %774 = vmatprep.subr.mxu0 %v653
        %775 = vmatpush2.msra.mxu0 %v652
        %776 = vmatprep.subr.mxu0 %v651
        %777 = vmatpush2.msra.mxu0 %v650
        %778 = vmatprep.subr.mxu0 %v649
        %779 = vmatpush2.msra.mxu0 %v648
        %780 = vmatprep.subr.mxu0 %v647
        %781 = vmatpush2.msra.mxu0 %v646
        %782 = vmatprep.subr.mxu0 %v645
        %783 = vmatpush2.msra.mxu0 %v644
        %784 = vmatprep.mubr.f32.mxu0 %v596
        %785 = vmatmul.mubr.f32.gmra.mxu0 %v605
        %v786 = vpop.f32.mrf.mxu0
        %v787 = vadd.f32 %v713, %v786
        %v788 = vpop.f32.mrf.mxu0
        %v789 = vadd.f32 %v717, %v788
        %790 = vmatprep.mubr.f32.mxu0 %v597
        %791 = vmatmul.mubr.f32.gmra.mxu0 %v602
        %v792 = vpop.f32.mrf.mxu0
        %v793 = vadd.f32 %v713, %v792
        %v794 = vpop.f32.mrf.mxu0
        %v795 = vadd.f32 %v717, %v794
        %796 = vdwg.mxu0
        %797 = vmatprep.subr.mxu0 %v707
        %798 = vmatpush1.msra.mxu0 %v706
        %799 = vmatprep.subr.mxu0 %v705
        %800 = vmatpush1.msra.mxu0 %v704
        %801 = vmatprep.subr.mxu0 %v703
        %802 = vmatpush1.msra.mxu0 %v702
        %803 = vmatprep.subr.mxu0 %v701
        %804 = vmatpush1.msra.mxu0 %v700
        %805 = vmatprep.subr.mxu0 %v699
        %806 = vmatpush1.msra.mxu0 %v698
        %807 = vmatprep.subr.mxu0 %v697
        %808 = vmatpush1.msra.mxu0 %v696
        %809 = vmatprep.subr.mxu0 %v695
        %810 = vmatpush1.msra.mxu0 %v694
        %811 = vmatprep.subr.mxu0 %v693
        %812 = vmatpush1.msra.mxu0 %v692
        %813 = vmatprep.subr.mxu0 %v691
        %814 = vmatpush1.msra.mxu0 %v690
        %815 = vmatprep.subr.mxu0 %v689
        %816 = vmatpush1.msra.mxu0 %v688
        %817 = vmatprep.subr.mxu0 %v687
        %818 = vmatpush1.msra.mxu0 %v686
        %819 = vmatprep.subr.mxu0 %v685
        %820 = vmatpush1.msra.mxu0 %v684
        %821 = vmatprep.subr.mxu0 %v683
        %822 = vmatpush1.msra.mxu0 %v682
        %823 = vmatprep.subr.mxu0 %v681
        %824 = vmatpush1.msra.mxu0 %v680
        %825 = vmatprep.subr.mxu0 %v679
        %826 = vmatpush1.msra.mxu0 %v678
        %827 = vmatprep.subr.mxu0 %v677
        %828 = vmatpush1.msra.mxu0 %v676
        %829 = vmatprep.subr.mxu0 0.0
        %830 = vmatpush2.msra.mxu0 0.0
        %831 = vmatprep.subr.mxu0 0.0
        %832 = vmatpush2.msra.mxu0 0.0
        %833 = vmatprep.subr.mxu0 0.0
        %834 = vmatpush2.msra.mxu0 0.0
        %835 = vmatprep.subr.mxu0 0.0
        %836 = vmatpush2.msra.mxu0 0.0
        %837 = vmatprep.subr.mxu0 0.0
        %838 = vmatpush2.msra.mxu0 0.0
        %839 = vmatprep.subr.mxu0 0.0
        %840 = vmatpush2.msra.mxu0 0.0
        %841 = vmatprep.subr.mxu0 0.0
        %842 = vmatpush2.msra.mxu0 0.0
        %843 = vmatprep.subr.mxu0 0.0
        %844 = vmatpush2.msra.mxu0 0.0
        %845 = vmatprep.subr.mxu0 0.0
        %846 = vmatpush2.msra.mxu0 0.0
        %847 = vmatprep.subr.mxu0 0.0
        %848 = vmatpush2.msra.mxu0 0.0
        %849 = vmatprep.subr.mxu0 0.0
        %850 = vmatpush2.msra.mxu0 0.0
        %851 = vmatprep.subr.mxu0 0.0
        %852 = vmatpush2.msra.mxu0 0.0
        %853 = vmatprep.subr.mxu0 0.0
        %854 = vmatpush2.msra.mxu0 0.0
        %855 = vmatprep.subr.mxu0 0.0
        %856 = vmatpush2.msra.mxu0 0.0
        %857 = vmatprep.subr.mxu0 0.0
        %858 = vmatpush2.msra.mxu0 0.0
        %859 = vmatprep.subr.mxu0 0.0
        %860 = vmatpush2.msra.mxu0 0.0
        %861 = vmatprep.mubr.f32.mxu0 0.0
        %862 = vmatmul.mubr.f32.gmra.mxu0 %v608
        %v863 = vpop.f32.mrf.mxu0
        %v864 = vadd.f32 %v787, %v863
        %v865 = vpop.f32.mrf.mxu0
        %v866 = vadd.f32 %v789, %v865
        %867 = vmatprep.mubr.f32.mxu0 0.0
        %868 = vmatmul.mubr.f32.gmra.mxu0 %v611
        %v869 = vpop.f32.mrf.mxu0
        %v870 = vadd.f32 %v793, %v869
        %v871 = vpop.f32.mrf.mxu0
        %v872 = vadd.f32 %v795, %v871
        %873 = vdwg.mxu0
        %v874 = vmax.f32 %v864, 0.0
        %v875 = vmax.f32 %v866, 0.0
        %v876 = vmax.f32 %v870, 0.0
        %v877 = vmax.f32 %v872, 0.0
        %v878 = vadd.f32 %v874, %v876
        %v879 = vrot.slane %v878, 4
        %v880 = vadd.f32 %v878, %v879
        %v881 = vrot.slane %v880, 2
        %v882 = vadd.f32 %v880, %v881
        %v883 = vrot.slane %v882, 1
        %v884 = vadd.f32 %v882, %v883
        %v885 = vadd.f32 %v875, %v877
        %v886 = vrot.slane %v885, 4
        %v887 = vadd.f32 %v885, %v886
        %v888 = vrot.slane %v887, 2
        %v889 = vadd.f32 %v887, %v888
        %v890 = vrot.slane %v889, 1
        %v891 = vadd.f32 %v889, %v890
        %v892 = vld [vmem:[%s7] sm:$0xff]
        %v893 = vld [vmem:[%s7 + $0x8] sm:$0xff]
        %v894 = vld [vmem:[%s7 + $0x10] sm:$0xff]
        %v895 = vld [vmem:[%s7 + $0x18] sm:$0xff]
        %v896 = vld [vmem:[%s7 + $0x20] sm:$0xff]
        %v897 = vld [vmem:[%s7 + $0x28] sm:$0xff]
        %v898 = vld [vmem:[%s7 + $0x30] sm:$0xff]
        %v899 = vld [vmem:[%s7 + $0x38] sm:$0xff]
        %v900 = vld [vmem:[%s7 + $0x40] sm:$0xff]
        %v901 = vld [vmem:[%s7 + $0x48] sm:$0xff]
        %v902 = vld [vmem:[%s7 + $0x50] sm:$0xff]
        %v903 = vld [vmem:[%s7 + $0x58] sm:$0xff]
        %v904 = vld [vmem:[%s7 + $0x60] sm:$0xff]
        %v905 = vld [vmem:[%s7 + $0x68] sm:$0xff]
        %v906 = vld [vmem:[%s7 + $0x70] sm:$0xff]
        %v907 = vld [vmem:[%s7 + $0x78] sm:$0xff]
        %v908 = vld [vmem:[%s7 + $0x80] sm:$0xff]
        %v909 = vld [vmem:[%s7 + $0x88] sm:$0xff]
        %v910 = vld [vmem:[%s7 + $0x90] sm:$0xff]
        %v911 = vld [vmem:[%s7 + $0x98] sm:$0xff]
        %v912 = vld [vmem:[%s7 + $0xa0] sm:$0xff]
        %v913 = vld [vmem:[%s7 + $0xa8] sm:$0xff]
        %v914 = vld [vmem:[%s7 + $0xb0] sm:$0xff]
        %v915 = vld [vmem:[%s7 + $0xb8] sm:$0xff]
        %v916 = vld [vmem:[%s7 + $0xc0] sm:$0xff]
        %v917 = vld [vmem:[%s7 + $0xc8] sm:$0xff]
        %v918 = vld [vmem:[%s7 + $0xd0] sm:$0xff]
        %v919 = vld [vmem:[%s7 + $0xd8] sm:$0xff]
        %v920 = vld [vmem:[%s7 + $0xe0] sm:$0xff]
        %v921 = vld [vmem:[%s7 + $0xe8] sm:$0xff]
        %v922 = vld [vmem:[%s7 + $0xf0] sm:$0xff]
        %v923 = vld [vmem:[%s7 + $0xf8] sm:$0xff]
        %v924 = vld [vmem:[%s8] sm:$0x1]
        %925 = vmatprep.subr.mxu0 0.0
        %926 = vmatpush1.msra.mxu0 %v907
        %927 = vmatprep.subr.mxu0 0.0
        %928 = vmatpush1.msra.mxu0 %v906
        %929 = vmatprep.subr.mxu0 0.0
        %930 = vmatpush1.msra.mxu0 %v905
        %931 = vmatprep.subr.mxu0 0.0
        %932 = vmatpush1.msra.mxu0 %v904
        %933 = vmatprep.subr.mxu0 0.0
        %934 = vmatpush1.msra.mxu0 %v903
        %935 = vmatprep.subr.mxu0 0.0
        %936 = vmatpush1.msra.mxu0 %v902
        %937 = vmatprep.subr.mxu0 0.0
        %938 = vmatpush1.msra.mxu0 %v901
        %939 = vmatprep.subr.mxu0 0.0
        %940 = vmatpush1.msra.mxu0 %v900
        %941 = vmatprep.subr.mxu0 0.0
        %942 = vmatpush1.msra.mxu0 %v899
        %943 = vmatprep.subr.mxu0 0.0
        %944 = vmatpush1.msra.mxu0 %v898
        %945 = vmatprep.subr.mxu0 0.0
        %946 = vmatpush1.msra.mxu0 %v897
        %947 = vmatprep.subr.mxu0 0.0
        %948 = vmatpush1.msra.mxu0 %v896
        %949 = vmatprep.subr.mxu0 0.0
        %950 = vmatpush1.msra.mxu0 %v895
        %951 = vmatprep.subr.mxu0 0.0
        %952 = vmatpush1.msra.mxu0 %v894
        %953 = vmatprep.subr.mxu0 0.0
        %954 = vmatpush1.msra.mxu0 %v893
        %955 = vmatprep.subr.mxu0 0.0
        %956 = vmatpush1.msra.mxu0 %v892
        %957 = vmatprep.subr.mxu0 0.0
        %958 = vmatpush2.msra.mxu0 %v923
        %959 = vmatprep.subr.mxu0 0.0
        %960 = vmatpush2.msra.mxu0 %v922
        %961 = vmatprep.subr.mxu0 0.0
        %962 = vmatpush2.msra.mxu0 %v921
        %963 = vmatprep.subr.mxu0 0.0
        %964 = vmatpush2.msra.mxu0 %v920
        %965 = vmatprep.subr.mxu0 0.0
        %966 = vmatpush2.msra.mxu0 %v919
        %967 = vmatprep.subr.mxu0 0.0
        %968 = vmatpush2.msra.mxu0 %v918
        %969 = vmatprep.subr.mxu0 0.0
        %970 = vmatpush2.msra.mxu0 %v917
        %971 = vmatprep.subr.mxu0 0.0
        %972 = vmatpush2.msra.mxu0 %v916
        %973 = vmatprep.subr.mxu0 0.0
        %974 = vmatpush2.msra.mxu0 %v915
        %975 = vmatprep.subr.mxu0 0.0
        %976 = vmatpush2.msra.mxu0 %v914
        %977 = vmatprep.subr.mxu0 0.0
        %978 = vmatpush2.msra.mxu0 %v913
        %979 = vmatprep.subr.mxu0 0.0
        %980 = vmatpush2.msra.mxu0 %v912
        %981 = vmatprep.subr.mxu0 0.0
        %982 = vmatpush2.msra.mxu0 %v911
        %983 = vmatprep.subr.mxu0 0.0
        %984 = vmatpush2.msra.mxu0 %v910
        %985 = vmatprep.subr.mxu0 0.0
        %986 = vmatpush2.msra.mxu0 %v909
        %987 = vmatprep.subr.mxu0 0.0
        %988 = vmatpush2.msra.mxu0 %v908
        %989 = vmatprep.mubr.f32.mxu0 %v891
        %990 = vmatmul.mubr.f32.gmra.mxu0 %v884
        %v991 = vpop.f32.mrf.mxu0
        %v992 = vadd.f32 %v924, %v991
        %v993 = vpop.f32.mrf.mxu0
        %994 = vdwg.mxu0
        %995 = vst [vmem:[%s324] sm:$0x1] %v992
        %s996 = sand.u32 %s225, 1
        %s997 = scalar_lea.sflag [#allocation3], %s996
        %s998 = sand.u32 %s225, 1
        %s999 = scalar_lea.vmem [#allocation2], %s998
        // Predicated region
        $region57: #{temporal_cnn_forward.1} parent=55 // pred_check
          %p1000 = pneg %p235
        $region58: #{temporal_cnn_forward.1} parent=55 // pred_check_branch
          %1002 = sbr.rel (%p1000) target = $region60
        $region59: #{temporal_cnn_forward.1} parent=55 // pred_region
          %s1004 = ssub.s32 16, 16
          %1005 = vsyncadd %s997, %s1004
          %s1006 = smul.addr %s23, 16
          %s1007 = scalar_lea.hbm %s9, %s1006
          %s1009 = sshll.u32 %s999, 4
          %s1010 = int_to_ptr.vmem [resolvable:$true] %s1009
          %1012 = dma.vmem_to_hbm [thread:$0]  %s1010, 16, %s1007, %s997
        $region60: #{temporal_cnn_forward.1} parent=55 // pred_fallthru
          _
      $region56: #{temporal_cnn_forward.1} parent=5 // pred_fallthru
        _
      %p1013 = scmp.le.s32.totalorder 2, %s18
      // Predicated region
      $region61: #{temporal_cnn_forward.1} parent=5 // pred_check
        %p1014 = pneg %p1013
      $region62: #{temporal_cnn_forward.1} parent=5 // pred_check_branch
        %1016 = sbr.rel (%p1014) target = $region64
      $region63: #{temporal_cnn_forward.1} parent=5 // pred_region
        %s1017 = ssub.s32 %s18, 2
        // Predicated region
        $region65: #{temporal_cnn_forward.1} parent=63 // pred_check
          %p1018 = pneg %p241
        $region66: #{temporal_cnn_forward.1} parent=63 // pred_check_branch
          %1020 = sbr.rel (%p1018) target = $region68
        $region67: #{temporal_cnn_forward.1} parent=63 // pred_region
          %s1021 = sand.u32 %s226, 1
          %s1022 = scalar_lea.sflag [#allocation3], %s1021
          %s1023 = sand.u32 %s226, 1
          %s1024 = scalar_lea.vmem [#allocation2], %s1023
          %1025 = dma.done %s1022, 16
        $region68: #{temporal_cnn_forward.1} parent=63 // pred_fallthru
          _
      $region64: #{temporal_cnn_forward.1} parent=5 // pred_fallthru
        _
    $region6: #{temporal_cnn_forward.1} parent=1 // loop_footer
      %s22 = sadd.s32 1, %s18
    $region7: #{temporal_cnn_forward.1} parent=1 // loop_footer_branch
      %17 = sbr.rel target = $region3
    $region8: #{temporal_cnn_forward.1} parent=1 // loop_exit
      _
    %1026 = vsyncpa [#allocation3], 1
    %s1027 = scalar_lea.sflag [#allocation3], 1
    %1028 = vsyncpa %s1027, 1

</llo_original>
